<compile_context>
chip_gen: v7x
topology: tpu7x:2x2x1
jax: 0.10.0
libtpu: 0.0.40
codegen_flags: <defaults>
</compile_context>

<pallas_src>
import jax
import jax.numpy as jnp
from jax.experimental import pallas as pl
from jax.experimental.pallas import tpu as pltpu


def _largest_divisor_leq(n, target):
    t = max(1, min(n, int(target)))
    while n % t:
        t -= 1
    return t


# ---------------------------------------------------------------------------
# Kernel 1: ConvTranspose2d(k=2, s=2), one output row-phase (ki) per grid step.
# Output array (N, H1, 2, W1, 2*Cu) row-major-reshapes (for free) into the
# upsampled (N, 2*H1, 2*W1, Cu) NHWC image -> no post-kernel scatter pass.
# ---------------------------------------------------------------------------
def _conv_transpose_kernel(x1_ref, w_ref, b_ref, o_ref):
    # x1: (1, TH1, W1, C1); w: (1, C1, 2*Cu) [this ki phase]; b: (1, 2*Cu)
    # o : (1, TH1, 1, W1, 2*Cu)
    _, th1, w1, c1 = x1_ref.shape
    x = x1_ref[0].reshape(th1 * w1, c1)        # merges leading dims only (free)
    y = jnp.dot(x, w_ref[0], preferred_element_type=jnp.float32) + b_ref[...]
    o_ref[...] = y.reshape(o_ref.shape).astype(o_ref.dtype)


def conv_transpose_2x2_s2(x1_nhwc, w_t, b, *, row_tile=None):
    """x1: (N,H1,W1,C1); w_t: torch layout (C1, Cu, 2, 2); b: (Cu,)."""
    N, H1, W1, C1 = x1_nhwc.shape
    Cu = w_t.shape[1]
    # (ki, C1, kj*Cu + c): one (C1, 2*Cu) matmul per row phase ki.
    w_arr = jnp.transpose(w_t, (2, 0, 3, 1)).reshape(2, C1, 2 * Cu)
    b2 = jnp.tile(b, 2).reshape(1, 2 * Cu)

    th1 = _largest_divisor_leq(H1, 256 if row_tile is None else row_tile)
    grid = (N, H1 // th1, 2)

    y = pl.pallas_call(
        _conv_transpose_kernel,
        out_shape=jax.ShapeDtypeStruct((N, H1, 2, W1, 2 * Cu), jnp.float32),
        grid=grid,
        in_specs=[
            pl.BlockSpec((1, th1, W1, C1), lambda n, t, ki: (n, t, 0, 0)),
            pl.BlockSpec((1, C1, 2 * Cu), lambda n, t, ki: (ki, 0, 0)),
            pl.BlockSpec((1, 2 * Cu), lambda n, t, ki: (0, 0)),
        ],
        out_specs=pl.BlockSpec((1, th1, 1, W1, 2 * Cu),
                               lambda n, t, ki: (n, t, ki, 0, 0)),
        compiler_params=pltpu.CompilerParams(
            dimension_semantics=("parallel", "parallel", "parallel")),
    )(x1_nhwc, w_arr, b2)

    # Row-major reshape == the 2x sub-pixel interleave: no transpose, no copy.
    return y.reshape(N, 2 * H1, 2 * W1, Cu)


# ---------------------------------------------------------------------------
# Kernel 2: fused pad + concat + 3x3 conv + BatchNorm(folded) + ReLU.
# Grid = (N, H-tiles).  Halo rows come in as separate single-row BlockSpecs
# (clamped index_map, masked with pl.when at the image boundary).
# ---------------------------------------------------------------------------
def _conv3x3_bn_relu_kernel(x2c_ref, x2t_ref, x2b_ref,
                            upc_ref, upt_ref, upb_ref,
                            w2_ref, wu_ref, scale_ref, shift_ref,
                            o_ref, pad2_ref, padu_ref, acc_ref):
    h = pl.program_id(1)
    nh = pl.num_programs(1)
    _, TH, W, Cout = o_ref.shape
    C2 = x2c_ref.shape[-1]
    Cu = upc_ref.shape[-1]

    # --- assemble zero-padded tiles in VMEM (fused F.pad + torch.cat) -------
    pad2_ref[...] = jnp.zeros_like(pad2_ref)
    padu_ref[...] = jnp.zeros_like(padu_ref)
    pad2_ref[1:TH + 1, 1:W + 1, :] = x2c_ref[0]
    padu_ref[1:TH + 1, 1:W + 1, :] = upc_ref[0]

    @pl.when(h > 0)
    def _():                                    # halo row above the tile
        pad2_ref[0:1, 1:W + 1, :] = x2t_ref[0]
        padu_ref[0:1, 1:W + 1, :] = upt_ref[0]

    @pl.when(h < nh - 1)
    def _():                                    # halo row below the tile
        pad2_ref[TH + 1:TH + 2, 1:W + 1, :] = x2b_ref[0]
        padu_ref[TH + 1:TH + 2, 1:W + 1, :] = upb_ref[0]

    # --- 3x3 conv: 9 shifted matmuls into a VMEM scratch accumulator --------
    acc_ref[...] = jnp.zeros_like(acc_ref)
    for ki in range(3):
        for kj in range(3):
            k = ki * 3 + kj
            p2 = pad2_ref[ki:ki + TH, kj:kj + W, :].reshape(TH * W, C2)
            pu = padu_ref[ki:ki + TH, kj:kj + W, :].reshape(TH * W, Cu)
            acc_ref[...] += (
                jnp.dot(p2, w2_ref[k], preferred_element_type=jnp.float32)
                + jnp.dot(pu, wu_ref[k], preferred_element_type=jnp.float32))

    # --- folded BatchNorm + ReLU epilogue (free VPU slots) -------------------
    y = acc_ref[...] * scale_ref[...] + shift_ref[...]
    o_ref[...] = jnp.maximum(y, 0.0).reshape(o_ref.shape).astype(o_ref.dtype)


def single_conv_bn_relu(x2_nhwc, up_nhwc, w_t, bias, gamma, beta, mean, var,
                        *, eps=1e-5, row_tile=None):
    """Fused cat([x2, up]) -> Conv2d(3x3, pad=1) -> BatchNorm(eval) -> ReLU.

    w_t: torch layout (Cout, C2 + Cu, 3, 3); concat channel order [x2 | up].
    """
    N, H, W, C2 = x2_nhwc.shape
    Cu = up_nhwc.shape[-1]
    Cout = w_t.shape[0]

    wk = jnp.transpose(w_t, (2, 3, 1, 0))            # (3, 3, Cin, Cout)
    w2 = wk[:, :, :C2, :].reshape(9, C2, Cout)       # skip-connection taps
    wu = wk[:, :, C2:, :].reshape(9, Cu, Cout)       # upsampled-branch taps
    scale = gamma / jnp.sqrt(var + eps)
    shift = (beta + (bias - mean) * scale).reshape(1, Cout)
    scale = scale.reshape(1, Cout)

    if row_tile is None:
        # bound per-step VMEM (double-buffered streams + scratch) to ~8 MiB
        bytes_per_row = 4 * W * (3 * (C2 + Cu) + 3 * Cout)
        row_tile = max(1, (8 << 20) // max(1, bytes_per_row))
    th = _largest_divisor_leq(H, row_tile)
    grid = (N, H // th)

    centre = lambda n, h: (n, h, 0, 0)
    top = lambda n, h: (n, jnp.maximum(h * th - 1, 0), 0, 0)
    bot = lambda n, h: (n, jnp.minimum(h * th + th, H - 1), 0, 0)
    const3 = lambda n, h: (0, 0, 0)
    const2 = lambda n, h: (0, 0)

    return pl.pallas_call(
        _conv3x3_bn_relu_kernel,
        out_shape=jax.ShapeDtypeStruct((N, H, W, Cout), jnp.float32),
        grid=grid,
        in_specs=[
            pl.BlockSpec((1, th, W, C2), centre),    # x2 centre rows
            pl.BlockSpec((1, 1, W, C2), top),        # x2 halo row above
            pl.BlockSpec((1, 1, W, C2), bot),        # x2 halo row below
            pl.BlockSpec((1, th, W, Cu), centre),    # up centre rows
            pl.BlockSpec((1, 1, W, Cu), top),        # up halo row above
            pl.BlockSpec((1, 1, W, Cu), bot),        # up halo row below
            pl.BlockSpec((9, C2, Cout), const3),     # conv weight (skip part)
            pl.BlockSpec((9, Cu, Cout), const3),     # conv weight (up part)
            pl.BlockSpec((1, Cout), const2),         # BN scale (resident)
            pl.BlockSpec((1, Cout), const2),         # BN shift (resident)
        ],
        out_specs=pl.BlockSpec((1, th, W, Cout), centre),
        scratch_shapes=[
            pltpu.VMEM((th + 2, W + 2, C2), jnp.float32),
            pltpu.VMEM((th + 2, W + 2, Cu), jnp.float32),
            pltpu.VMEM((th * W, Cout), jnp.float32),
        ],
        compiler_params=pltpu.CompilerParams(
            dimension_semantics=("parallel", "parallel")),
    )(x2_nhwc, x2_nhwc, x2_nhwc, up_nhwc, up_nhwc, up_nhwc,
      w2, wu, scale, shift)


# ---------------------------------------------------------------------------
# Up.forward
# ---------------------------------------------------------------------------
def up_forward(params, x1_nchw, x2_nchw, *, row_tile=None, up_row_tile=None):
    # NCHW (PyTorch) -> NHWC (kernel layout)
    x1 = jnp.transpose(x1_nchw, (0, 2, 3, 1))
    x2 = jnp.transpose(x2_nchw, (0, 2, 3, 1))

    # upsample; result is already in interleaved NHWC layout (no scatter pass)
    up = conv_transpose_2x2_s2(x1, params["up_w"], params["up_b"],
                               row_tile=up_row_tile)

    # F.pad([diffX//2, diffX-diffX//2, diffY//2, diffY-diffY//2])
    diffY = x2.shape[1] - up.shape[1]
    diffX = x2.shape[2] - up.shape[2]
    if diffY or diffX:
        # TODO(synk): negative diffs (crop) are not supported.
        up = jnp.pad(up, ((0, 0),
                          (diffY // 2, diffY - diffY // 2),
                          (diffX // 2, diffX - diffX // 2),
                          (0, 0)))

    # fused cat + conv3x3 + BN + ReLU (the concat never materializes in HBM)
    y = single_conv_bn_relu(x2, up, params["conv_w"], params["conv_b"],
                            params["bn_gamma"], params["bn_beta"],
                            params["bn_mean"], params["bn_var"],
                            row_tile=row_tile)
    return jnp.transpose(y, (0, 3, 1, 2))  # back to NCHW


# ---------------------------------------------------------------------------
# Pure-JAX reference (independent code path) for a correctness check.
# ---------------------------------------------------------------------------
def up_reference(params, x1_nchw, x2_nchw, eps=1e-5):
    x1 = jnp.transpose(x1_nchw, (0, 2, 3, 1))
    x2 = jnp.transpose(x2_nchw, (0, 2, 3, 1))
    N, H, W, _ = x1.shape
    Cout_up = params["up_w"].shape[1]
    up = jnp.einsum("nhwi,iokl->nhkwlo", x1, params["up_w"])
    up = up.reshape(N, 2 * H, 2 * W, Cout_up) + params["up_b"]
    diffY = x2.shape[1] - up.shape[1]
    diffX = x2.shape[2] - up.shape[2]
    up = jnp.pad(up, ((0, 0),
                      (diffY // 2, diffY - diffY // 2),
                      (diffX // 2, diffX - diffX // 2),
                      (0, 0)))
    x = jnp.concatenate([x2, up], axis=-1)
    w_hwio = jnp.transpose(params["conv_w"], (2, 3, 1, 0))
    conv = jax.lax.conv_general_dilated(
        x, w_hwio, (1, 1), "SAME",
        dimension_numbers=("NHWC", "HWIO", "NHWC")) + params["conv_b"]
    scale = params["bn_gamma"] / jnp.sqrt(params["bn_var"] + eps)
    y = jnp.maximum((conv - params["bn_mean"]) * scale + params["bn_beta"], 0.0)
    return jnp.transpose(y, (0, 3, 1, 2))


if __name__ == "__main__":
    in_channels, out_channels = 8, 8

    key = jax.random.PRNGKey(0)
    kp, k1, k2, k3, k4 = jax.random.split(key, 5)
    ks = jax.random.split(kp, 8)
    params = {
        # ConvTranspose2d(in_ch, in_ch//2, 2, 2): weight (Cin, Cout, 2, 2)
        "up_w": 0.1 * jax.random.normal(
            ks[0], (in_channels, in_channels // 2, 2, 2), jnp.float32),
        "up_b": 0.1 * jax.random.normal(ks[1], (in_channels // 2,), jnp.float32),
        # Conv2d(in_ch, out_ch, 3, pad=1): weight (Cout, Cin, 3, 3)
        "conv_w": 0.1 * jax.random.normal(
            ks[2], (out_channels, in_channels, 3, 3), jnp.float32),
        "conv_b": 0.1 * jax.random.normal(ks[3], (out_channels,), jnp.float32),
        # BatchNorm2d(out_ch), eval-mode running stats
        "bn_gamma": 1.0 + 0.1 * jax.random.normal(ks[4], (out_channels,), jnp.float32),
        "bn_beta": 0.1 * jax.random.normal(ks[5], (out_channels,), jnp.float32),
        "bn_mean": 0.1 * jax.random.normal(ks[6], (out_channels,), jnp.float32),
        "bn_var": jnp.abs(1.0 + 0.1 * jax.random.normal(
            ks[7], (out_channels,), jnp.float32)),
    }

    # Case A: standard UNet shapes (x2 = exactly 2x of x1); small row tiles so
    # multiple H-tiles, halo rows and both boundary branches are exercised.
    N, H1, W1 = 2, 8, 8
    x1a = jax.random.normal(k1, (N, in_channels, H1, W1), jnp.float32)
    x2a = jax.random.normal(k2, (N, in_channels // 2, 2 * H1, 2 * W1), jnp.float32)
    out_a = jax.block_until_ready(up_forward(params, x1a, x2a,
                                             row_tile=4, up_row_tile=4))
    ref_a = jax.block_until_ready(up_reference(params, x1a, x2a))
    assert out_a.shape == (N, out_channels, 2 * H1, 2 * W1), out_a.shape
    assert bool(jnp.all(jnp.isfinite(out_a)))
    assert jnp.allclose(out_a, ref_a, atol=1e-4, rtol=1e-4), \
        float(jnp.max(jnp.abs(out_a - ref_a)))

    # Case B: x2 larger than the upsampled x1 (exercises the F.pad branch) and
    # auto-selected (single-tile) tiling.
    x1b = jax.random.normal(k3, (N, in_channels, H1, W1), jnp.float32)
    x2b = jax.random.normal(
        k4, (N, in_channels // 2, 2 * H1 + 2, 2 * W1 + 2), jnp.float32)
    out_b = jax.block_until_ready(up_forward(params, x1b, x2b))
    ref_b = jax.block_until_ready(up_reference(params, x1b, x2b))
    assert out_b.shape == (N, out_channels, 2 * H1 + 2, 2 * W1 + 2), out_b.shape
    assert bool(jnp.all(jnp.isfinite(out_b)))
    assert jnp.allclose(out_b, ref_b, atol=1e-4, rtol=1e-4), \
        float(jnp.max(jnp.abs(out_b - ref_b)))

    print("KERNEL_OK")
</pallas_src>

<mosaic_0001>
module attributes {stable_mosaic.version = 11 : i64} {
  func.func @_conv_transpose_kernel(%arg0: i32, %arg1: i32, %arg2: i32, %arg3: memref<1x4x8x8xf32, #tpu.memory_space<vmem>>, %arg4: memref<1x8x8xf32, #tpu.memory_space<vmem>>, %arg5: memref<1x8xf32, #tpu.memory_space<vmem>>, %arg6: memref<1x4x1x8x8xf32, #tpu.memory_space<vmem>>) attributes {dimension_semantics = [#tpu.dimension_semantics<parallel>, #tpu.dimension_semantics<parallel>, #tpu.dimension_semantics<parallel>], iteration_bounds = array<i64: 2, 2, 2>, scalar_prefetch = 0 : i64, scratch_operands = 0 : i64, tpu.core_type = #tpu.core_type<tc>, window_params = [{transform_indices = @transform_0, window_bounds = array<i64: 1, 4, 8, 8>}, {transform_indices = @transform_1, window_bounds = array<i64: 1, 8, 8>}, {pipeline_mode = #tpu.pipeline_mode<synchronous>, transform_indices = @transform_2, window_bounds = array<i64: 1, 8>}, {transform_indices = @transform_3, window_bounds = array<i64: 1, 4, 1, 8, 8>}]} {
    %c0 = arith.constant 0 : index
    %c0_0 = arith.constant 0 : index
    %c0_1 = arith.constant 0 : index
    %c0_2 = arith.constant 0 : index
    %0 = vector.load %arg3[%c0, %c0_0, %c0_1, %c0_2] : memref<1x4x8x8xf32, #tpu.memory_space<vmem>>, vector<1x4x8x8xf32>
    %1 = vector.shape_cast %0 : vector<1x4x8x8xf32> to vector<4x8x8xf32>
    %2 = vector.shape_cast %1 : vector<4x8x8xf32> to vector<32x8xf32>
    %c0_3 = arith.constant 0 : index
    %c0_4 = arith.constant 0 : index
    %c0_5 = arith.constant 0 : index
    %3 = vector.load %arg4[%c0_3, %c0_4, %c0_5] : memref<1x8x8xf32, #tpu.memory_space<vmem>>, vector<1x8x8xf32>
    %4 = vector.shape_cast %3 : vector<1x8x8xf32> to vector<8x8xf32>
    %cst = arith.constant dense<0.000000e+00> : vector<32x8xf32>
    %5 = tpu.matmul %2, %4, %cst {dimension_numbers = #tpu.dot_dimension_numbers<[1], [0], [0], [1], [0, 0, 1, 1], [], []>} : vector<32x8xf32>, vector<8x8xf32>, vector<32x8xf32> -> vector<32x8xf32>
    %c0_6 = arith.constant 0 : index
    %c0_7 = arith.constant 0 : index
    %6 = vector.load %arg5[%c0_6, %c0_7] : memref<1x8xf32, #tpu.memory_space<vmem>>, vector<1x8xf32>
    %7 = vector.broadcast %6 : vector<1x8xf32> to vector<32x8xf32>
    %8 = arith.addf %5, %7 : vector<32x8xf32>
    %9 = vector.shape_cast %8 : vector<32x8xf32> to vector<1x4x1x8x8xf32>
    %c0_8 = arith.constant 0 : index
    %c0_9 = arith.constant 0 : index
    %c0_10 = arith.constant 0 : index
    %c0_11 = arith.constant 0 : index
    %c0_12 = arith.constant 0 : index
    %10 = vector.load %arg6[%c0_8, %c0_9, %c0_10, %c0_11, %c0_12] : memref<1x4x1x8x8xf32, #tpu.memory_space<vmem>>, vector<1x4x1x8x8xf32>
    tpu.vector_store %arg6[%c0_8, %c0_9, %c0_10, %c0_11, %c0_12], %9 {strides = array<i32>} : memref<1x4x1x8x8xf32, #tpu.memory_space<vmem>>, vector<1x4x1x8x8xf32>,
    return
  }
  func.func @transform_0(%arg0: i32, %arg1: i32, %arg2: i32) -> (i32, i32, i32, i32) {
    %c0_i32 = arith.constant 0 : i32
    %c0_i32_0 = arith.constant 0 : i32
    %c0_i32_1 = arith.constant 0 : i32
    return %arg0, %arg1, %c0_i32, %c0_i32_0 : i32, i32, i32, i32
  }
  func.func @transform_1(%arg0: i32, %arg1: i32, %arg2: i32) -> (i32, i32, i32) {
    %c0_i32 = arith.constant 0 : i32
    %c0_i32_0 = arith.constant 0 : i32
    %c0_i32_1 = arith.constant 0 : i32
    return %arg2, %c0_i32, %c0_i32_0 : i32, i32, i32
  }
  func.func @transform_2(%arg0: i32, %arg1: i32, %arg2: i32) -> (i32, i32) {
    %c0_i32 = arith.constant 0 : i32
    %c0_i32_0 = arith.constant 0 : i32
    %c0_i32_1 = arith.constant 0 : i32
    return %c0_i32, %c0_i32_0 : i32, i32
  }
  func.func @transform_3(%arg0: i32, %arg1: i32, %arg2: i32) -> (i32, i32, i32, i32, i32) {
    %c0_i32 = arith.constant 0 : i32
    %c0_i32_0 = arith.constant 0 : i32
    %c0_i32_1 = arith.constant 0 : i32
    return %arg0, %arg1, %arg2, %c0_i32, %c0_i32_0 : i32, i32, i32, i32, i32
  }
}

</mosaic_0001>

<llo_original>
// kernel: tpu_custom_call.1
$region0: #{tpu_custom_call.1}
  #allocation0 [shape = 'u32[]', space=smem, size = 0x4, offset = 0x4, fixed_abs, tag = 'smem constant byte address 0x4 - core index']
  #allocation1 [shape = 'u32[144,128]{1,0:T(1,128)}', space=vmem, size = 0x12000, scoped, tag = 'internal scratch']
  %s0 = inlined_call_operand.hbm [shape: f32[2,8,8,8], index: 0, kind: input, shape index: {}]
  %s1 = inlined_call_operand.hbm [shape: f32[2,8,8], index: 1, kind: input, shape index: {}]
  %s2 = inlined_call_operand.vmem [shape: f32[1,8], index: 2, kind: input, shape index: {}]
  %s3 = inlined_call_operand.hbm [shape: f32[2,8,2,8,8], index: 3, kind: output, shape index: {}]
  %s4 = sld [smem:[#allocation0]]
  $region53: #{tpu_custom_call.1} parent=0
    _
  %s6 = ssub.s32 1, %s4
  %s7 = scalar_select 0, %s6, %s4
  $region1: #{tpu_custom_call.1} parent=0
    #allocation2 [shape = 'u8[32768]{0}', space=vmem, size = 0x8000, scoped, tag = 'input window, operand 0']
    #allocation3 [shape = 's32[2]{0}', space=sflag, size = 0x8, scoped, tag = 'scoped memory for tpu_custom_call.1']
    #allocation4 [shape = 's32[2]{0}', space=sflag, size = 0x8, scoped, tag = 'scoped memory for tpu_custom_call.1']
    #allocation5 [shape = 'u8[8192]{0}', space=vmem, size = 0x2000, scoped, tag = 'input window, operand 1']
    #allocation6 [shape = 's32[2]{0}', space=sflag, size = 0x8, scoped, tag = 'scoped memory for tpu_custom_call.1']
    #allocation7 [shape = 'u8[32768]{0}', space=vmem, size = 0x8000, scoped, tag = 'output window, operand 0']
    %8 = vsyncpa [#allocation3], 0
    %s9 = scalar_lea.sflag [#allocation3], 1
    %10 = vsyncpa %s9, 0
    %11 = vsyncpa [#allocation6], 0
    %s12 = scalar_lea.sflag [#allocation6], 1
    %13 = vsyncpa %s12, 0
    %14 = vsyncpa [#allocation4], 0
    %s15 = scalar_lea.sflag [#allocation4], 1
    %16 = vsyncpa %s15, 0
    loop: start=0, step=1, limit=10
    $region2: #{tpu_custom_call.1} parent=1 // loop_pre_header
      _
    $region3: #{tpu_custom_call.1} parent=1 // loop_header
      %s18 = sphi 0, %s22
      %p19 = scmp.ge.s32.totalorder %s18, 10
      %s25 = sphi 0, %s44
      %s26 = sphi 0, %s40
      %s27 = sphi 0, %s36
      %s28 = sphi 0, %s25
      %s29 = sphi 0, %s26
      %s30 = sphi 0, %s27
      %s31 = sphi 0, %s28
      %s32 = sphi 0, %s29
      %s33 = sphi 0, %s30
      %s49 = sphi 0, %s51
      %s52 = sphi 0, %s49
      %s53 = sphi 0, %s52
      %s69 = sphi 0, %s53
      %s75 = sphi 0, %s77
      %s78 = sphi 0, %s75
      %s79 = sphi 0, %s78
      %s95 = sphi 0, %s79
      %s99 = sphi 0, %s99
      %s101 = sphi 0, %s99
      %s102 = sphi 0, %s101
      %s116 = sphi 0, %s102
      %s126 = sphi 0, %s128
      %s129 = sphi 0, %s126
      %s130 = sphi 0, %s129
      %s146 = sphi 0, %s130
    $region4: #{tpu_custom_call.1} parent=1 // loop_header_branch
      %21 = sbr.rel (%p19) target = $region8
    $region5: #{tpu_custom_call.1} parent=1 // loop_body
      %s23 = ssub.s32 %s18, 1
      %s24 = ssub.s32 %s18, 2
      %s34 = sadd.s32 1, %s27
      %p35 = scmp.ge.s32.totalorder %s34, 2
      %s36 = scalar_select %p35, 0, %s34
      %s37 = sadd.s32 1, %s26
      %s38 = scalar_select %p35, %s37, %s26
      %p39 = scmp.ge.s32.totalorder %s38, 2
      %s40 = scalar_select %p39, 0, %s38
      %s41 = sadd.s32 1, %s25
      %s42 = scalar_select %p39, %s41, %s25
      %p43 = scmp.ge.s32.totalorder %s42, 2
      %s44 = scalar_select %p43, 0, %s42
      %s45 = ssub.s32 %s25, %s44
      %s46 = ssub.s32 %s26, %s40
      %s47 = sor.u32 %s45, %s46
      %p48 = scmp.eq.s32.totalorder %s47, 0
      %s50 = sadd.s32 %s49, 1
      %s51 = scalar_select %p48, %s49, %s50
      %p54 = pneg %p48
      %p55 = scmp.eq.s32.totalorder %s18, 7
      %p56 = por %p54, %p55
      %p57 = scmp.ne.s32.totalorder %s49, %s52
      %p58 = scmp.eq.s32.totalorder %s18, 0
      %p59 = por %p57, %p58
      %p60 = scmp.ne.s32.totalorder %s49, %s52
      %p61 = scmp.eq.s32.totalorder %s23, 7
      %p62 = por %p60, %p61
      %p63 = scmp.ne.s32.totalorder %s52, %s53
      %p64 = scmp.eq.s32.totalorder %s23, 0
      %p65 = por %p63, %p64
      %p66 = scmp.ne.s32.totalorder %s52, %s53
      %p67 = scmp.eq.s32.totalorder %s24, 7
      %p68 = por %p66, %p67
      %p70 = scmp.ne.s32.totalorder %s53, %s69
      %p71 = scmp.eq.s32.totalorder %s24, 0
      %p72 = por %p70, %p71
      %s73 = ssub.s32 %s27, %s36
      %p74 = scmp.eq.s32.totalorder %s73, 0
      %s76 = sadd.s32 %s75, 1
      %s77 = scalar_select %p74, %s75, %s76
      %p80 = pneg %p74
      %p81 = scmp.eq.s32.totalorder %s18, 7
      %p82 = por %p80, %p81
      %p83 = scmp.ne.s32.totalorder %s75, %s78
      %p84 = scmp.eq.s32.totalorder %s18, 0
      %p85 = por %p83, %p84
      %p86 = scmp.ne.s32.totalorder %s75, %s78
      %p87 = scmp.eq.s32.totalorder %s23, 7
      %p88 = por %p86, %p87
      %p89 = scmp.ne.s32.totalorder %s78, %s79
      %p90 = scmp.eq.s32.totalorder %s23, 0
      %p91 = por %p89, %p90
      %p92 = scmp.ne.s32.totalorder %s78, %s79
      %p93 = scmp.eq.s32.totalorder %s24, 7
      %p94 = por %p92, %p93
      %p96 = scmp.ne.s32.totalorder %s79, %s95
      %p97 = scmp.eq.s32.totalorder %s24, 0
      %p98 = por %p96, %p97
      %s100 = sadd.s32 %s99, 1
      %p103 = scmp.eq.s32.totalorder %s18, 7
      %p104 = scmp.ne.s32.totalorder %s99, %s101
      %p105 = scmp.eq.s32.totalorder %s18, 0
      %p106 = por %p104, %p105
      %p107 = scmp.ne.s32.totalorder %s99, %s101
      %p108 = scmp.eq.s32.totalorder %s23, 7
      %p109 = por %p107, %p108
      %p110 = scmp.ne.s32.totalorder %s101, %s102
      %p111 = scmp.eq.s32.totalorder %s23, 0
      %p112 = por %p110, %p111
      %p113 = scmp.ne.s32.totalorder %s101, %s102
      %p114 = scmp.eq.s32.totalorder %s24, 7
      %p115 = por %p113, %p114
      %p117 = scmp.ne.s32.totalorder %s102, %s116
      %p118 = scmp.eq.s32.totalorder %s24, 0
      %p119 = por %p117, %p118
      %s120 = ssub.s32 %s25, %s44
      %s121 = ssub.s32 %s26, %s40
      %s122 = sor.u32 %s120, %s121
      %s123 = ssub.s32 %s27, %s36
      %s124 = sor.u32 %s122, %s123
      %p125 = scmp.eq.s32.totalorder %s124, 0
      %s127 = sadd.s32 %s126, 1
      %s128 = scalar_select %p125, %s126, %s127
      %p131 = pneg %p125
      %p132 = scmp.eq.s32.totalorder %s18, 7
      %p133 = por %p131, %p132
      %p134 = scmp.ne.s32.totalorder %s126, %s129
      %p135 = scmp.eq.s32.totalorder %s18, 0
      %p136 = por %p134, %p135
      %p137 = scmp.ne.s32.totalorder %s126, %s129
      %p138 = scmp.eq.s32.totalorder %s23, 7
      %p139 = por %p137, %p138
      %p140 = scmp.ne.s32.totalorder %s129, %s130
      %p141 = scmp.eq.s32.totalorder %s23, 0
      %p142 = por %p140, %p141
      %p143 = scmp.ne.s32.totalorder %s129, %s130
      %p144 = scmp.eq.s32.totalorder %s24, 7
      %p145 = por %p143, %p144
      %p147 = scmp.ne.s32.totalorder %s130, %s146
      %p148 = scmp.eq.s32.totalorder %s24, 0
      %p149 = por %p147, %p148
      %p150 = scmp.le.s32.totalorder 1, %s18
      %p151 = scmp.lt.s32.totalorder %s18, 9
      %p152 = pnand %p150, %p151
      %p153 = pneg %p152
      // Predicated region
      $region9: #{tpu_custom_call.1} parent=5 // pred_check
        _
      $region10: #{tpu_custom_call.1} parent=5 // pred_check_branch
        %155 = sbr.rel (%p152) target = $region12
      $region11: #{tpu_custom_call.1} parent=5 // pred_region
        %s156 = ssub.s32 %s18, 1
        // Predicated region
        $region13: #{tpu_custom_call.1} parent=11 // pred_check
          %p157 = pneg %p112
        $region14: #{tpu_custom_call.1} parent=11 // pred_check_branch
          %159 = sbr.rel (%p157) target = $region16
        $region15: #{tpu_custom_call.1} parent=11 // pred_region
          _
        $region16: #{tpu_custom_call.1} parent=11 // pred_fallthru
          _
      $region12: #{tpu_custom_call.1} parent=5 // pred_fallthru
        _
      %p160 = scmp.lt.s32.totalorder %s18, 8
      // Predicated region
      $region17: #{tpu_custom_call.1} parent=5 // pred_check
        %p161 = pneg %p160
      $region18: #{tpu_custom_call.1} parent=5 // pred_check_branch
        %163 = sbr.rel (%p161) target = $region20
      $region19: #{tpu_custom_call.1} parent=5 // pred_region
        // Predicated region
        $region21: #{tpu_custom_call.1} parent=19 // pred_check
          %p164 = pneg %p59
        $region22: #{tpu_custom_call.1} parent=19 // pred_check_branch
          %166 = sbr.rel (%p164) target = $region24
        $region23: #{tpu_custom_call.1} parent=19 // pred_region
          %s167 = sand.u32 %s49, 1
          %s168 = scalar_lea.sflag [#allocation3], %s167
          %s169 = sand.u32 %s49, 1
          %s170 = smul.addr %s169, 32
          %s171 = scalar_lea.vmem [#allocation2], %s170
          %s172 = smul.u32 4, %s26
          %s174 = ssub.s32 512, 512
          %175 = vsyncadd %s168, %s174
          %s176 = smul.addr %s25, 8
          %s177 = sadd.s32 %s172, %s176
          %s178 = smul.addr %s177, 128
          %s179 = scalar_lea.hbm %s0, %s178
          %s180 = sshll.u32 %s171, 4
          %s181 = int_to_ptr.vmem [resolvable:$true] %s180
          %186 = dma.hbm_to_vmem [thread:$0]  %s179, 512, %s181, %s168, 128, 128, 8
        $region24: #{tpu_custom_call.1} parent=19 // pred_fallthru
          _
        // Predicated region
        $region25: #{tpu_custom_call.1} parent=19 // pred_check
          %p187 = pneg %p85
        $region26: #{tpu_custom_call.1} parent=19 // pred_check_branch
          %189 = sbr.rel (%p187) target = $region28
        $region27: #{tpu_custom_call.1} parent=19 // pred_region
          %s190 = sand.u32 %s75, 1
          %s191 = scalar_lea.sflag [#allocation6], %s190
          %s192 = sand.u32 %s75, 1
          %s193 = smul.addr %s192, 8
          %s194 = scalar_lea.vmem [#allocation5], %s193
          %s196 = ssub.s32 128, 128
          %197 = vsyncadd %s191, %s196
          %s198 = smul.addr %s27, 128
          %s199 = scalar_lea.hbm %s1, %s198
          %s201 = sshll.u32 %s194, 4
          %s202 = int_to_ptr.vmem [resolvable:$true] %s201
          %204 = dma.hbm_to_vmem [thread:$0]  %s199, 128, %s202, %s191
        $region28: #{tpu_custom_call.1} parent=19 // pred_fallthru
          _
      $region20: #{tpu_custom_call.1} parent=5 // pred_fallthru
        _
      %p205 = scmp.le.s32.totalorder 1, %s18
      %p206 = scmp.lt.s32.totalorder %s18, 9
      %p207 = pnand %p205, %p206
      %p208 = pneg %p207
      // Predicated region
      $region29: #{tpu_custom_call.1} parent=5 // pred_check
        _
      $region30: #{tpu_custom_call.1} parent=5 // pred_check_branch
        %210 = sbr.rel (%p207) target = $region32
      $region31: #{tpu_custom_call.1} parent=5 // pred_region
        %s211 = ssub.s32 %s18, 1
        %s212 = sand.u32 %s52, 1
        %s213 = scalar_lea.sflag [#allocation3], %s212
        %s214 = sand.u32 %s52, 1
        %s215 = smul.addr %s214, 32
        %s216 = scalar_lea.vmem [#allocation2], %s215
        // Predicated region
        $region33: #{tpu_custom_call.1} parent=31 // pred_check
          %p217 = pneg %p65
        $region34: #{tpu_custom_call.1} parent=31 // pred_check_branch
          %219 = sbr.rel (%p217) target = $region36
        $region35: #{tpu_custom_call.1} parent=31 // pred_region
          %220 = dma.done %s213, 512
        $region36: #{tpu_custom_call.1} parent=31 // pred_fallthru
          _
        %s221 = sand.u32 %s78, 1
        %s222 = scalar_lea.sflag [#allocation6], %s221
        %s223 = sand.u32 %s78, 1
        %s224 = smul.addr %s223, 8
        %s225 = scalar_lea.vmem [#allocation5], %s224
        // Predicated region
        $region37: #{tpu_custom_call.1} parent=31 // pred_check
          %p226 = pneg %p91
        $region38: #{tpu_custom_call.1} parent=31 // pred_check_branch
          %228 = sbr.rel (%p226) target = $region40
        $region39: #{tpu_custom_call.1} parent=31 // pred_region
          %229 = dma.done %s222, 128
        $region40: #{tpu_custom_call.1} parent=31 // pred_fallthru
          _
        %s230 = sand.u32 %s52, 1
        %s231 = scalar_lea.sflag [#allocation3], %s230
        %s232 = sand.u32 %s52, 1
        %s233 = smul.addr %s232, 32
        %s234 = scalar_lea.vmem [#allocation2], %s233
        %p235 = pneg %p65
        %p236 = pneg %p62
        %s237 = sand.u32 %s78, 1
        %s238 = scalar_lea.sflag [#allocation6], %s237
        %s239 = sand.u32 %s78, 1
        %s240 = smul.addr %s239, 8
        %s241 = scalar_lea.vmem [#allocation5], %s240
        %p242 = pneg %p91
        %p243 = pneg %p88
        %p244 = pneg %p112
        %p245 = pneg %p109
        %p246 = pneg %p142
        %p247 = pneg %p139
        %s248 = sand.u32 %s129, 1
        %s249 = scalar_lea.sflag [#allocation4], %s248
        %s250 = sand.u32 %s129, 1
        %s251 = smul.addr %s250, 32
        %s252 = scalar_lea.vmem [#allocation7], %s251
        %s253 = smul.u32 4, %s29
        %s254 = smul.u32 4, %s29
        %v255 = vld [vmem:[%s216] sm:$0xff]
        %v256 = vld [vmem:[%s216 + $0x8] sm:$0xff]
        %v257 = vld [vmem:[%s216 + $0x10] sm:$0xff]
        %v258 = vld [vmem:[%s216 + $0x18] sm:$0xff]
        %v259 = vld [vmem:[%s225] sm:$0xff]
        %v260 = vld [vmem:[%s2] sm:$0x1]
        %v262 = vlaneseq
        %v263 = vshrl.u32 %v262, 7
        %v264 = vsub.s32 0, %v263
        %v265 = vrot.slane %v260, %v264
        %vm267 = vcmask 64512
        %v269 = vsel %vm267, %v255, 0
        %v272 = vsel %vm267, %v256, 0
        %v275 = vsel %vm267, %v257, 0
        %v278 = vsel %vm267, %v258, 0
        %280 = vmatprep.subr.mxu0 0.0
        %281 = vmatpush1.msra.mxu0 %v259
        %282 = vmatprep.subr.mxu0 0.0
        %283 = vmatpush1.msra.mxu0 0.0
        %284 = vmatprep.subr.mxu0 0.0
        %285 = vmatpush1.msra.mxu0 0.0
        %286 = vmatprep.subr.mxu0 0.0
        %287 = vmatpush1.msra.mxu0 0.0
        %288 = vmatprep.subr.mxu0 0.0
        %289 = vmatpush1.msra.mxu0 0.0
        %290 = vmatprep.subr.mxu0 0.0
        %291 = vmatpush1.msra.mxu0 0.0
        %292 = vmatprep.subr.mxu0 0.0
        %293 = vmatpush1.msra.mxu0 0.0
        %294 = vmatprep.subr.mxu0 0.0
        %295 = vmatpush1.msra.mxu0 0.0
        %296 = vmatprep.subr.mxu0 0.0
        %297 = vmatpush1.msra.mxu0 0.0
        %298 = vmatprep.subr.mxu0 0.0
        %299 = vmatpush1.msra.mxu0 0.0
        %300 = vmatprep.subr.mxu0 0.0
        %301 = vmatpush1.msra.mxu0 0.0
        %302 = vmatprep.subr.mxu0 0.0
        %303 = vmatpush1.msra.mxu0 0.0
        %304 = vmatprep.subr.mxu0 0.0
        %305 = vmatpush1.msra.mxu0 0.0
        %306 = vmatprep.subr.mxu0 0.0
        %307 = vmatpush1.msra.mxu0 0.0
        %308 = vmatprep.subr.mxu0 0.0
        %309 = vmatpush1.msra.mxu0 0.0
        %310 = vmatprep.subr.mxu0 0.0
        %311 = vmatpush1.msra.mxu0 0.0
        %312 = vmatprep.subr.mxu0 0.0
        %313 = vmatpush1.msra.mxu0 0.0
        %314 = vmatprep.subr.mxu0 0.0
        %315 = vmatpush1.msra.mxu0 0.0
        %316 = vmatprep.subr.mxu0 0.0
        %317 = vmatpush1.msra.mxu0 0.0
        %318 = vmatprep.subr.mxu0 0.0
        %319 = vmatpush1.msra.mxu0 0.0
        %320 = vmatprep.subr.mxu0 0.0
        %321 = vmatpush1.msra.mxu0 0.0
        %322 = vmatprep.subr.mxu0 0.0
        %323 = vmatpush1.msra.mxu0 0.0
        %324 = vmatprep.subr.mxu0 0.0
        %325 = vmatpush1.msra.mxu0 0.0
        %326 = vmatprep.subr.mxu0 0.0
        %327 = vmatpush1.msra.mxu0 0.0
        %328 = vmatprep.subr.mxu0 0.0
        %329 = vmatpush1.msra.mxu0 0.0
        %330 = vmatprep.subr.mxu0 0.0
        %331 = vmatpush1.msra.mxu0 0.0
        %332 = vmatprep.subr.mxu0 0.0
        %333 = vmatpush1.msra.mxu0 0.0
        %334 = vmatprep.subr.mxu0 0.0
        %335 = vmatpush1.msra.mxu0 0.0
        %336 = vmatprep.subr.mxu0 0.0
        %337 = vmatpush1.msra.mxu0 0.0
        %338 = vmatprep.subr.mxu0 0.0
        %339 = vmatpush1.msra.mxu0 0.0
        %340 = vmatprep.subr.mxu0 0.0
        %341 = vmatpush1.msra.mxu0 0.0
        %342 = vmatprep.subr.mxu0 0.0
        %343 = vmatpush1.msra.mxu0 0.0
        %344 = vmatprep.mubr.f32.mxu0 0.0
        %345 = vmatmul.mubr.f32.gmra.mrb[0].mxu0 %v269
        %v346 = vpop.f32.mrb[0].mxu0
        %v347 = vadd.f32 %v265, %v346
        %v348 = vpop.f32.mrb[0].mxu0
        %349 = vmatprep.mubr.f32.mxu0 0.0
        %350 = vmatmul.mubr.f32.gmra.mrb[0].mxu0 %v272
        %v351 = vpop.f32.mrb[0].mxu0
        %v352 = vadd.f32 %v265, %v351
        %v353 = vpop.f32.mrb[0].mxu0
        %354 = vmatprep.mubr.f32.mxu0 0.0
        %355 = vmatmul.mubr.f32.gmra.mrb[0].mxu0 %v275
        %v356 = vpop.f32.mrb[0].mxu0
        %v357 = vadd.f32 %v265, %v356
        %v358 = vpop.f32.mrb[0].mxu0
        %359 = vmatprep.mubr.f32.mxu0 0.0
        %360 = vmatmul.mubr.f32.gmra.mrb[0].mxu0 %v278
        %v361 = vpop.f32.mrb[0].mxu0
        %v362 = vadd.f32 %v265, %v361
        %v363 = vpop.f32.mrb[0].mxu0
        %364 = vdwg.mxu0
        %365 = vst.msk [vmem:[%s252] sm:$0xff] %vm267, %v347
        %366 = vst.msk [vmem:[%s252 + $0x8] sm:$0xff] %vm267, %v352
        %367 = vst.msk [vmem:[%s252 + $0x10] sm:$0xff] %vm267, %v357
        %368 = vst.msk [vmem:[%s252 + $0x18] sm:$0xff] %vm267, %v362
        %s369 = sand.u32 %s129, 1
        %s370 = scalar_lea.sflag [#allocation4], %s369
        %s371 = sand.u32 %s129, 1
        %s372 = smul.addr %s371, 32
        %s373 = scalar_lea.vmem [#allocation7], %s372
        // Predicated region
        $region41: #{tpu_custom_call.1} parent=31 // pred_check
          %p374 = pneg %p139
        $region42: #{tpu_custom_call.1} parent=31 // pred_check_branch
          %376 = sbr.rel (%p374) target = $region44
        $region43: #{tpu_custom_call.1} parent=31 // pred_region
          %s377 = smul.u32 4, %s29
          %s379 = ssub.s32 512, 512
          %380 = vsyncadd %s370, %s379
          %s381 = smul.addr %s377, 2
          %s382 = sadd.s32 %s30, %s381
          %s383 = smul.addr %s28, 16
          %s384 = sadd.s32 %s382, %s383
          %s385 = smul.addr %s384, 128
          %s386 = scalar_lea.hbm %s3, %s385
          %s387 = sshll.u32 %s373, 4
          %s388 = int_to_ptr.vmem [resolvable:$true] %s387
          %393 = dma.vmem_to_hbm [thread:$0]  %s388, 512, %s386, %s370, 128, 256, 8
        $region44: #{tpu_custom_call.1} parent=31 // pred_fallthru
          _
      $region32: #{tpu_custom_call.1} parent=5 // pred_fallthru
        _
      %p394 = scmp.le.s32.totalorder 2, %s18
      // Predicated region
      $region45: #{tpu_custom_call.1} parent=5 // pred_check
        %p395 = pneg %p394
      $region46: #{tpu_custom_call.1} parent=5 // pred_check_branch
        %397 = sbr.rel (%p395) target = $region48
      $region47: #{tpu_custom_call.1} parent=5 // pred_region
        %s398 = ssub.s32 %s18, 2
        // Predicated region
        $region49: #{tpu_custom_call.1} parent=47 // pred_check
          %p399 = pneg %p145
        $region50: #{tpu_custom_call.1} parent=47 // pred_check_branch
          %401 = sbr.rel (%p399) target = $region52
        $region51: #{tpu_custom_call.1} parent=47 // pred_region
          %s402 = sand.u32 %s130, 1
          %s403 = scalar_lea.sflag [#allocation4], %s402
          %s404 = sand.u32 %s130, 1
          %s405 = smul.addr %s404, 32
          %s406 = scalar_lea.vmem [#allocation7], %s405
          %407 = dma.done %s403, 512
        $region52: #{tpu_custom_call.1} parent=47 // pred_fallthru
          _
      $region48: #{tpu_custom_call.1} parent=5 // pred_fallthru
        _
    $region6: #{tpu_custom_call.1} parent=1 // loop_footer
      %s22 = sadd.s32 1, %s18
    $region7: #{tpu_custom_call.1} parent=1 // loop_footer_branch
      %17 = sbr.rel target = $region3
    $region8: #{tpu_custom_call.1} parent=1 // loop_exit
      _
    %408 = vsyncpa [#allocation3], 1
    %s409 = scalar_lea.sflag [#allocation3], 1
    %410 = vsyncpa %s409, 1
    %411 = vsyncpa [#allocation6], 1
    %s412 = scalar_lea.sflag [#allocation6], 1
    %413 = vsyncpa %s412, 1
    %414 = vsyncpa [#allocation4], 1
    %s415 = scalar_lea.sflag [#allocation4], 1
    %416 = vsyncpa %s415, 1

</llo_original>
